<compile_context>
chip_gen: v5e
topology: v5e:2x2
jax: 0.10.0
libtpu: 0.0.40
codegen_flags: <defaults>
</compile_context>

<pallas_src>
import functools

import jax
import jax.numpy as jnp
from jax.experimental import pallas as pl
from jax.experimental.pallas import tpu as pltpu

_LANES = 128
# ~2 MiB of f32-equivalent elements per input block: large enough to amortize
# per-grid-step overhead (important on v7x), small enough that 2 inputs x 2
# pipeline buffers stay well inside v5e's 16 MiB default scoped-VMEM limit.
_TARGET_BLOCK_ELEMS = (2 * 1024 * 1024) // 4


def _cdiv(a, b):
    return -(-a // b)


def _round_up(a, b):
    return _cdiv(a, b) * b


def _fs2_loss_kernel(small_ref, mel_ref, tgt_ref, out_ref, acc_ref, *,
                     inv_mel_n, inv_small_n, tile_rows, n_rows, need_mask):
    # program_id / num_programs hoisted here; never called inside pl.when.
    step = pl.program_id(0)
    last = pl.num_programs(0) - 1

    @pl.when(step == 0)
    def _init():
        acc_ref[...] = jnp.zeros_like(acc_ref)

    a = mel_ref[...].astype(jnp.float32)
    b = tgt_ref[...].astype(jnp.float32)
    absd = jnp.abs(a - b)
    if need_mask:
        # The last block overhangs the array; out-of-bounds rows hold
        # unspecified data, so select them to zero (where = select, NaN-safe).
        row = step * tile_rows + jax.lax.broadcasted_iota(
            jnp.int32, absd.shape, 0)
        absd = jnp.where(row < n_rows, absd, 0.0)
    # Running per-lane partial sums; the cross-lane reduce happens once below.
    acc_ref[...] += jnp.sum(absd, axis=0, keepdims=True)

    @pl.when(step == last)
    def _finalize():
        mel_loss = jnp.sum(acc_ref[...]) * inv_mel_n

        s = small_ref[...].astype(jnp.float32)    # (6, B, L), resident in VMEM
        dd = s[0] - jnp.log(s[1] + 1.0)           # log-duration vs log(tgt + 1)
        pp = s[2] - s[3]                          # log-pitch
        ee = s[4] - s[5]                          # energy
        duration_loss = jnp.sum(dd * dd) * inv_small_n
        pitch_loss = jnp.sum(pp * pp) * inv_small_n
        energy_loss = jnp.sum(ee * ee) * inv_small_n

        total_loss = mel_loss + duration_loss + pitch_loss + energy_loss

        # Scatter the five losses into lanes 0..4 of the (8, 128) output block.
        col = jax.lax.broadcasted_iota(jnp.int32, (8, _LANES), 1)
        tile = (jnp.where(col == 0, total_loss, 0.0)
                + jnp.where(col == 1, mel_loss, 0.0)
                + jnp.where(col == 2, duration_loss, 0.0)
                + jnp.where(col == 3, pitch_loss, 0.0)
                + jnp.where(col == 4, energy_loss, 0.0))
        out_ref[...] = tile.astype(out_ref.dtype)


def fastspeech2_loss(
    mel, log_duration_predicted, log_pitch_predicted, energy_predicted,
    mel_target, duration_predictor_target, log_pitch_target, energy_target,
):
    assert mel.shape == mel_target.shape
    n_mel = mel.size
    n_small = log_duration_predicted.size

    # Pack the six tiny (B, L) tensors into one (6, B, L) f32 array: a single
    # resident VMEM block instead of six near-empty padded ones.
    small = jnp.stack([
        log_duration_predicted.astype(jnp.float32),
        duration_predictor_target.astype(jnp.float32),
        log_pitch_predicted.astype(jnp.float32),
        log_pitch_target.astype(jnp.float32),
        energy_predicted.astype(jnp.float32),
        energy_target.astype(jnp.float32),
    ])

    # Free leading-dim collapse (no jnp.pad, no materialized HBM copy): keep
    # the native last dim, block over rows, mask the ragged tail in-kernel.
    row_cols = mel.shape[-1]
    mel_rows = mel.reshape(-1, row_cols)       # native dtype; cast in-kernel
    tgt_rows = mel_target.reshape(-1, row_cols)
    n_rows = mel_rows.shape[0]

    # Sublane multiple for the native dtype (8 f32, 16 bf16, 32 int8/fp8).
    itemsize = jnp.dtype(mel.dtype).itemsize
    sublane = max(8, 32 // max(itemsize, 1))

    budget_rows = _round_up(
        max(_TARGET_BLOCK_ELEMS // max(row_cols, 1), 1), sublane)
    if n_rows <= budget_rows:
        tile_rows = n_rows        # one full-extent block (always legal)
        need_mask = False
    else:
        tile_rows = budget_rows   # sublane-aligned streaming tile
        need_mask = (n_rows % tile_rows) != 0
    n_steps = _cdiv(n_rows, tile_rows)

    kernel = functools.partial(
        _fs2_loss_kernel,
        inv_mel_n=1.0 / float(n_mel),
        inv_small_n=1.0 / float(n_small),
        tile_rows=tile_rows,
        n_rows=n_rows,
        need_mask=need_mask,
    )

    # TODO(synk): on dual-TC v7x, add a leading CORE_PARALLEL grid axis (or
    # pl.core_map over create_tensorcore_mesh) to stream disjoint row halves
    # on both TensorCores; kept single-axis here for portability to v5e/v6e.
    out = pl.pallas_call(
        kernel,
        out_shape=jax.ShapeDtypeStruct((8, _LANES), jnp.float32),
        grid_spec=pltpu.PrefetchScalarGridSpec(
            num_scalar_prefetch=0,
            grid=(n_steps,),
            in_specs=[
                pl.BlockSpec(small.shape, lambda i: (0, 0, 0)),
                pl.BlockSpec((tile_rows, row_cols), lambda i: (i, 0)),
                pl.BlockSpec((tile_rows, row_cols), lambda i: (i, 0)),
            ],
            out_specs=pl.BlockSpec((8, _LANES), lambda i: (0, 0)),
            scratch_shapes=[pltpu.VMEM((1, row_cols), jnp.float32)],
        ),
        compiler_params=pltpu.CompilerParams(
            dimension_semantics=("arbitrary",),
        ),
    )(small, mel_rows, tgt_rows)

    parts = out[0, :5]
    return parts[0], parts[1], parts[2], parts[3], parts[4]


def _reference(mel, log_dur_pred, log_pitch_pred, energy_pred,
               mel_target, dur_target, log_pitch_target, energy_target):
    mel_loss = jnp.mean(jnp.abs(mel - mel_target))
    duration_loss = jnp.mean(
        (log_dur_pred - jnp.log(dur_target.astype(jnp.float32) + 1.0)) ** 2)
    pitch_loss = jnp.mean((log_pitch_pred - log_pitch_target) ** 2)
    energy_loss = jnp.mean((energy_pred - energy_target) ** 2)
    total = mel_loss + duration_loss + pitch_loss + energy_loss
    return total, mel_loss, duration_loss, pitch_loss, energy_loss


if __name__ == "__main__":
    key = jax.random.PRNGKey(0)
    k = jax.random.split(key, 8)

    B, T, M = 2, 16, 32   # batch, mel frames, mel channels
    L = 8                 # phoneme sequence length

    mel = jax.random.normal(k[0], (B, T, M), dtype=jnp.float32)
    mel_target = jax.random.normal(k[1], (B, T, M), dtype=jnp.float32)
    log_duration_predicted = jax.random.normal(k[2], (B, L), dtype=jnp.float32)
    duration_predictor_target = jax.random.randint(
        k[3], (B, L), 1, 10, dtype=jnp.int32)
    log_pitch_predicted = jax.random.normal(k[4], (B, L), dtype=jnp.float32)
    log_pitch_target = jax.random.normal(k[5], (B, L), dtype=jnp.float32)
    energy_predicted = jax.random.normal(k[6], (B, L), dtype=jnp.float32)
    energy_target = jax.random.normal(k[7], (B, L), dtype=jnp.float32)

    result = fastspeech2_loss(
        mel, log_duration_predicted, log_pitch_predicted, energy_predicted,
        mel_target, duration_predictor_target, log_pitch_target, energy_target,
    )
    result = jax.block_until_ready(result)

    ref = _reference(
        mel, log_duration_predicted, log_pitch_predicted, energy_predicted,
        mel_target, duration_predictor_target, log_pitch_target, energy_target,
    )

    for got, want in zip(result, ref):
        assert jnp.allclose(got, want, rtol=1e-5, atol=1e-5), (got, want)

    print("KERNEL_OK")
</pallas_src>

<mosaic_0001>
module attributes {stable_mosaic.version = 11 : i64} {
  func.func @_fs2_loss_kernel(%arg0: i32, %arg1: memref<6x2x8xf32, #tpu.memory_space<vmem>>, %arg2: memref<32x32xf32, #tpu.memory_space<vmem>>, %arg3: memref<32x32xf32, #tpu.memory_space<vmem>>, %arg4: memref<8x128xf32, #tpu.memory_space<vmem>>, %arg5: memref<1x32xf32, #tpu.memory_space<vmem>>) attributes {dimension_semantics = [#tpu.dimension_semantics<arbitrary>], iteration_bounds = array<i64: 1>, scalar_prefetch = 0 : i64, scratch_operands = 1 : i64, tpu.core_type = #tpu.core_type<tc>, window_params = [{pipeline_mode = #tpu.pipeline_mode<synchronous>, transform_indices = @transform_0, window_bounds = array<i64: 6, 2, 8>}, {transform_indices = @transform_1, window_bounds = array<i64: 32, 32>}, {transform_indices = @transform_2, window_bounds = array<i64: 32, 32>}, {pipeline_mode = #tpu.pipeline_mode<synchronous>, transform_indices = @transform_3, window_bounds = array<i64: 8, 128>}]} {
    %c0_i32 = arith.constant 0 : i32
    %0 = arith.cmpi eq, %arg0, %c0_i32 : i32
    %1 = arith.extui %0 : i1 to i32
    %c0_i32_0 = arith.constant 0 : i32
    %2 = arith.cmpi ne, %1, %c0_i32_0 : i32
    scf.if %2 {
      %cst_10 = arith.constant 0.000000e+00 : f32
      %15 = vector.broadcast %cst_10 : f32 to vector<1x32xf32>
      %c0_11 = arith.constant 0 : index
      %c0_12 = arith.constant 0 : index
      %16 = vector.load %arg5[%c0_11, %c0_12] : memref<1x32xf32, #tpu.memory_space<vmem>>, vector<1x32xf32>
      tpu.vector_store %arg5[%c0_11, %c0_12], %15 {strides = array<i32>} : memref<1x32xf32, #tpu.memory_space<vmem>>, vector<1x32xf32>,
    } else {
    }
    %c0 = arith.constant 0 : index
    %c0_1 = arith.constant 0 : index
    %3 = vector.load %arg2[%c0, %c0_1] : memref<32x32xf32, #tpu.memory_space<vmem>>, vector<32x32xf32>
    %c0_2 = arith.constant 0 : index
    %c0_3 = arith.constant 0 : index
    %4 = vector.load %arg3[%c0_2, %c0_3] : memref<32x32xf32, #tpu.memory_space<vmem>>, vector<32x32xf32>
    %5 = arith.subf %3, %4 : vector<32x32xf32>
    %6 = math.absf %5 : vector<32x32xf32>
    %c0_4 = arith.constant 0 : index
    %c0_5 = arith.constant 0 : index
    %7 = vector.load %arg5[%c0_4, %c0_5] : memref<1x32xf32, #tpu.memory_space<vmem>>, vector<1x32xf32>
    %cst = arith.constant dense<0.000000e+00> : vector<32xf32>
    %8 = vector.multi_reduction <add>, %6, %cst [0] : vector<32x32xf32> to vector<32xf32>
    %9 = vector.shape_cast %8 : vector<32xf32> to vector<1x32xf32>
    %10 = arith.addf %7, %9 : vector<1x32xf32>
    %c0_6 = arith.constant 0 : index
    %c0_7 = arith.constant 0 : index
    %11 = vector.load %arg5[%c0_6, %c0_7] : memref<1x32xf32, #tpu.memory_space<vmem>>, vector<1x32xf32>
    tpu.vector_store %arg5[%c0_6, %c0_7], %10 {strides = array<i32>} : memref<1x32xf32, #tpu.memory_space<vmem>>, vector<1x32xf32>,
    %c0_i32_8 = arith.constant 0 : i32
    %12 = arith.cmpi eq, %arg0, %c0_i32_8 : i32
    %13 = arith.extui %12 : i1 to i32
    %c0_i32_9 = arith.constant 0 : i32
    %14 = arith.cmpi ne, %13, %c0_i32_9 : i32
    scf.if %14 {
      %c0_10 = arith.constant 0 : index
      %c0_11 = arith.constant 0 : index
      %15 = vector.load %arg5[%c0_10, %c0_11] : memref<1x32xf32, #tpu.memory_space<vmem>>, vector<1x32xf32>
      %16 = vector.shape_cast %15 : vector<1x32xf32> to vector<1x1x32xf32>
      %cst_12 = arith.constant dense<0.000000e+00> : vector<1xf32>
      %17 = vector.multi_reduction <add>, %16, %cst_12 [1, 2] : vector<1x1x32xf32> to vector<1xf32>
      %18 = vector.shape_cast %17 : vector<1xf32> to vector<1x1x1xf32>
      %19 = vector.extract %18[0, 0, 0] : f32 from vector<1x1x1xf32>
      %cst_13 = arith.constant 9.765625E-4 : f32
      %20 = arith.mulf %19, %cst_13 : f32
      %c0_14 = arith.constant 0 : index
      %c0_15 = arith.constant 0 : index
      %c0_16 = arith.constant 0 : index
      %21 = vector.load %arg1[%c0_14, %c0_15, %c0_16] : memref<6x2x8xf32, #tpu.memory_space<vmem>>, vector<6x2x8xf32>
      %22 = vector.extract_strided_slice %21 {offsets = [0, 0, 0], sizes = [1, 2, 8], strides = [1, 1, 1]} : vector<6x2x8xf32> to vector<1x2x8xf32>
      %23 = vector.shape_cast %22 : vector<1x2x8xf32> to vector<2x8xf32>
      %24 = vector.extract_strided_slice %21 {offsets = [1, 0, 0], sizes = [1, 2, 8], strides = [1, 1, 1]} : vector<6x2x8xf32> to vector<1x2x8xf32>
      %25 = vector.shape_cast %24 : vector<1x2x8xf32> to vector<2x8xf32>
      %cst_17 = arith.constant 1.000000e+00 : f32
      %26 = vector.broadcast %cst_17 : f32 to vector<2x8xf32>
      %27 = arith.addf %25, %26 : vector<2x8xf32>
      %28 = math.log %27 : vector<2x8xf32>
      %29 = arith.subf %23, %28 : vector<2x8xf32>
      %30 = vector.extract_strided_slice %21 {offsets = [2, 0, 0], sizes = [1, 2, 8], strides = [1, 1, 1]} : vector<6x2x8xf32> to vector<1x2x8xf32>
      %31 = vector.shape_cast %30 : vector<1x2x8xf32> to vector<2x8xf32>
      %32 = vector.extract_strided_slice %21 {offsets = [3, 0, 0], sizes = [1, 2, 8], strides = [1, 1, 1]} : vector<6x2x8xf32> to vector<1x2x8xf32>
      %33 = vector.shape_cast %32 : vector<1x2x8xf32> to vector<2x8xf32>
      %34 = arith.subf %31, %33 : vector<2x8xf32>
      %35 = vector.extract_strided_slice %21 {offsets = [4, 0, 0], sizes = [1, 2, 8], strides = [1, 1, 1]} : vector<6x2x8xf32> to vector<1x2x8xf32>
      %36 = vector.shape_cast %35 : vector<1x2x8xf32> to vector<2x8xf32>
      %37 = vector.extract_strided_slice %21 {offsets = [5, 0, 0], sizes = [1, 2, 8], strides = [1, 1, 1]} : vector<6x2x8xf32> to vector<1x2x8xf32>
      %38 = vector.shape_cast %37 : vector<1x2x8xf32> to vector<2x8xf32>
      %39 = arith.subf %36, %38 : vector<2x8xf32>
      %40 = arith.mulf %29, %29 : vector<2x8xf32>
      %41 = vector.shape_cast %40 : vector<2x8xf32> to vector<1x2x8xf32>
      %cst_18 = arith.constant dense<0.000000e+00> : vector<1xf32>
      %42 = vector.multi_reduction <add>, %41, %cst_18 [1, 2] : vector<1x2x8xf32> to vector<1xf32>
      %43 = vector.shape_cast %42 : vector<1xf32> to vector<1x1x1xf32>
      %44 = vector.extract %43[0, 0, 0] : f32 from vector<1x1x1xf32>
      %cst_19 = arith.constant 6.250000e-02 : f32
      %45 = arith.mulf %44, %cst_19 : f32
      %46 = arith.mulf %34, %34 : vector<2x8xf32>
      %47 = vector.shape_cast %46 : vector<2x8xf32> to vector<1x2x8xf32>
      %cst_20 = arith.constant dense<0.000000e+00> : vector<1xf32>
      %48 = vector.multi_reduction <add>, %47, %cst_20 [1, 2] : vector<1x2x8xf32> to vector<1xf32>
      %49 = vector.shape_cast %48 : vector<1xf32> to vector<1x1x1xf32>
      %50 = vector.extract %49[0, 0, 0] : f32 from vector<1x1x1xf32>
      %cst_21 = arith.constant 6.250000e-02 : f32
      %51 = arith.mulf %50, %cst_21 : f32
      %52 = arith.mulf %39, %39 : vector<2x8xf32>
      %53 = vector.shape_cast %52 : vector<2x8xf32> to vector<1x2x8xf32>
      %cst_22 = arith.constant dense<0.000000e+00> : vector<1xf32>
      %54 = vector.multi_reduction <add>, %53, %cst_22 [1, 2] : vector<1x2x8xf32> to vector<1xf32>
      %55 = vector.shape_cast %54 : vector<1xf32> to vector<1x1x1xf32>
      %56 = vector.extract %55[0, 0, 0] : f32 from vector<1x1x1xf32>
      %cst_23 = arith.constant 6.250000e-02 : f32
      %57 = arith.mulf %56, %cst_23 : f32
      %58 = arith.addf %20, %45 : f32
      %59 = arith.addf %58, %51 : f32
      %60 = arith.addf %59, %57 : f32
      %61 = tpu.iota {dimensions = array<i32: 1>} : vector<8x128xi32>
      %c0_i32_24 = arith.constant 0 : i32
      %62 = vector.broadcast %c0_i32_24 : i32 to vector<8x128xi32>
      %63 = arith.cmpi eq, %61, %62 : vector<8x128xi32>
      %cst_25 = arith.constant 0.000000e+00 : f32
      %64 = vector.broadcast %60 : f32 to vector<8x128xf32>
      %65 = vector.broadcast %cst_25 : f32 to vector<8x128xf32>
      %66 = arith.select %63, %64, %65 : vector<8x128xi1>, vector<8x128xf32>
      %c1_i32 = arith.constant 1 : i32
      %67 = vector.broadcast %c1_i32 : i32 to vector<8x128xi32>
      %68 = arith.cmpi eq, %61, %67 : vector<8x128xi32>
      %cst_26 = arith.constant 0.000000e+00 : f32
      %69 = vector.broadcast %20 : f32 to vector<8x128xf32>
      %70 = vector.broadcast %cst_26 : f32 to vector<8x128xf32>
      %71 = arith.select %68, %69, %70 : vector<8x128xi1>, vector<8x128xf32>
      %72 = arith.addf %66, %71 : vector<8x128xf32>
      %c2_i32 = arith.constant 2 : i32
      %73 = vector.broadcast %c2_i32 : i32 to vector<8x128xi32>
      %74 = arith.cmpi eq, %61, %73 : vector<8x128xi32>
      %cst_27 = arith.constant 0.000000e+00 : f32
      %75 = vector.broadcast %45 : f32 to vector<8x128xf32>
      %76 = vector.broadcast %cst_27 : f32 to vector<8x128xf32>
      %77 = arith.select %74, %75, %76 : vector<8x128xi1>, vector<8x128xf32>
      %78 = arith.addf %72, %77 : vector<8x128xf32>
      %c3_i32 = arith.constant 3 : i32
      %79 = vector.broadcast %c3_i32 : i32 to vector<8x128xi32>
      %80 = arith.cmpi eq, %61, %79 : vector<8x128xi32>
      %cst_28 = arith.constant 0.000000e+00 : f32
      %81 = vector.broadcast %51 : f32 to vector<8x128xf32>
      %82 = vector.broadcast %cst_28 : f32 to vector<8x128xf32>
      %83 = arith.select %80, %81, %82 : vector<8x128xi1>, vector<8x128xf32>
      %84 = arith.addf %78, %83 : vector<8x128xf32>
      %c4_i32 = arith.constant 4 : i32
      %85 = vector.broadcast %c4_i32 : i32 to vector<8x128xi32>
      %86 = arith.cmpi eq, %61, %85 : vector<8x128xi32>
      %cst_29 = arith.constant 0.000000e+00 : f32
      %87 = vector.broadcast %57 : f32 to vector<8x128xf32>
      %88 = vector.broadcast %cst_29 : f32 to vector<8x128xf32>
      %89 = arith.select %86, %87, %88 : vector<8x128xi1>, vector<8x128xf32>
      %90 = arith.addf %84, %89 : vector<8x128xf32>
      %c0_30 = arith.constant 0 : index
      %c0_31 = arith.constant 0 : index
      %91 = vector.load %arg4[%c0_30, %c0_31] : memref<8x128xf32, #tpu.memory_space<vmem>>, vector<8x128xf32>
      tpu.vector_store %arg4[%c0_30, %c0_31], %90 {strides = array<i32>} : memref<8x128xf32, #tpu.memory_space<vmem>>, vector<8x128xf32>,
    } else {
    }
    return
  }
  func.func @transform_0(%arg0: i32) -> (i32, i32, i32) {
    %c0_i32 = arith.constant 0 : i32
    %c0_i32_0 = arith.constant 0 : i32
    %c0_i32_1 = arith.constant 0 : i32
    %c0_i32_2 = arith.constant 0 : i32
    return %c0_i32, %c0_i32_0, %c0_i32_1 : i32, i32, i32
  }
  func.func @transform_1(%arg0: i32) -> (i32, i32) {
    %c0_i32 = arith.constant 0 : i32
    %c0_i32_0 = arith.constant 0 : i32
    return %arg0, %c0_i32 : i32, i32
  }
  func.func @transform_2(%arg0: i32) -> (i32, i32) {
    %c0_i32 = arith.constant 0 : i32
    %c0_i32_0 = arith.constant 0 : i32
    return %arg0, %c0_i32 : i32, i32
  }
  func.func @transform_3(%arg0: i32) -> (i32, i32) {
    %c0_i32 = arith.constant 0 : i32
    %c0_i32_0 = arith.constant 0 : i32
    %c0_i32_1 = arith.constant 0 : i32
    return %c0_i32, %c0_i32_0 : i32, i32
  }
}

</mosaic_0001>

<llo_original>
// kernel: tpu_custom_call.1
$region0: #{tpu_custom_call.1}
  #allocation0 [shape = 'u32[]', space=smem, size = 0x4, offset = 0x4, fixed_abs, tag = 'smem constant byte address 0x4 - core index']
  #allocation1 [shape = 'u32[72,128]{1,0:T(1,128)}', space=vmem, size = 0x9000, scoped, tag = 'internal scratch']
  #allocation2 [shape = 'f32[1,32]{1,0:T(1,128)}', space=vmem, size = 0x200, scoped, tag = 'scratch operand']
  %s0 = inlined_call_operand.hbm [shape: f32[6,2,8], index: 0, kind: input, shape index: {}]
  %s1 = inlined_call_operand.hbm [shape: f32[32,32], index: 1, kind: input, shape index: {}]
  %s2 = inlined_call_operand.hbm [shape: f32[32,32], index: 2, kind: input, shape index: {}]
  %s3 = inlined_call_operand.hbm [shape: f32[8,128], index: 3, kind: output, shape index: {}]
  %s4 = sld [smem:[#allocation0]]
  $region42: #{tpu_custom_call.1} parent=0
    _
  %s6 = ssub.s32 1, %s4
  %s7 = scalar_select 0, %s6, %s4
  $region1: #{tpu_custom_call.1} parent=0
    #allocation3 [shape = 'u8[6144]{0}', space=vmem, size = 0x1800, scoped, tag = 'input window, operand 0, single buffered']
    #allocation4 [shape = 's32[1]{0}', space=sflag, size = 0x4, scoped, tag = 'scoped memory for tpu_custom_call.1']
    #allocation5 [shape = 's32[1]{0}', space=sflag, size = 0x4, scoped, tag = 'scoped memory for tpu_custom_call.1']
    #allocation6 [shape = 'u8[16384]{0}', space=vmem, size = 0x4000, scoped, tag = 'input window, operand 1, single buffered']
    #allocation7 [shape = 's32[1]{0}', space=sflag, size = 0x4, scoped, tag = 'scoped memory for tpu_custom_call.1']
    #allocation8 [shape = 'u8[16384]{0}', space=vmem, size = 0x4000, scoped, tag = 'input window, operand 2, single buffered']
    #allocation9 [shape = 'u8[4096]{0}', space=vmem, size = 0x1000, scoped, tag = 'output window, operand 0, single buffered']
    %8 = vsyncpa [#allocation4], 0
    %9 = vsyncpa [#allocation7], 0
    %10 = vsyncpa [#allocation5], 0
    // Predicated region
    $region2: #{tpu_custom_call.1} parent=1 // pred_check
      _
    $region3: #{tpu_custom_call.1} parent=1 // pred_check_branch
      %12 = sbr.rel (0) target = $region5
    $region4: #{tpu_custom_call.1} parent=1 // pred_region
      %14 = vsyncadd [#allocation4], 0
      %s15 = sshll.u32 %s0, 4
      %s16 = int_to_ptr.hbm [resolvable:$true] %s15
      %s17 = sshll.u32 [#allocation3], 4
      %s18 = int_to_ptr.vmem [resolvable:$true] %s17
      %23 = dma.hbm_to_vmem [thread:$0]  %s16, 192, %s18, [#allocation4], 32, 32, 2
    $region5: #{tpu_custom_call.1} parent=1 // pred_fallthru
      _
    // Predicated region
    $region6: #{tpu_custom_call.1} parent=1 // pred_check
      _
    $region7: #{tpu_custom_call.1} parent=1 // pred_check_branch
      %25 = sbr.rel (0) target = $region9
    $region8: #{tpu_custom_call.1} parent=1 // pred_region
      %27 = vsyncadd [#allocation7], 0
      %s28 = sshll.u32 %s1, 4
      %s29 = int_to_ptr.hbm [resolvable:$true] %s28
      %s30 = sshll.u32 [#allocation6], 4
      %s31 = int_to_ptr.vmem [resolvable:$true] %s30
      %36 = dma.hbm_to_vmem [thread:$0]  %s29, 512, %s31, [#allocation7], 128, 128, 8
    $region9: #{tpu_custom_call.1} parent=1 // pred_fallthru
      _
    // Predicated region
    $region10: #{tpu_custom_call.1} parent=1 // pred_check
      _
    $region11: #{tpu_custom_call.1} parent=1 // pred_check_branch
      %38 = sbr.rel (0) target = $region13
    $region12: #{tpu_custom_call.1} parent=1 // pred_region
      %40 = vsyncadd [#allocation7], 0
      %s41 = sshll.u32 %s2, 4
      %s42 = int_to_ptr.hbm [resolvable:$true] %s41
      %s43 = sshll.u32 [#allocation8], 4
      %s44 = int_to_ptr.vmem [resolvable:$true] %s43
      %49 = dma.hbm_to_vmem [thread:$0]  %s42, 512, %s44, [#allocation7], 128, 128, 8
    $region13: #{tpu_custom_call.1} parent=1 // pred_fallthru
      _
    // Predicated region
    $region14: #{tpu_custom_call.1} parent=1 // pred_check
      _
    $region15: #{tpu_custom_call.1} parent=1 // pred_check_branch
      %51 = sbr.rel (0) target = $region17
    $region16: #{tpu_custom_call.1} parent=1 // pred_region
      %53 = dma.done [#allocation4], 192
    $region17: #{tpu_custom_call.1} parent=1 // pred_fallthru
      _
    // Predicated region
    $region18: #{tpu_custom_call.1} parent=1 // pred_check
      _
    $region19: #{tpu_custom_call.1} parent=1 // pred_check_branch
      %55 = sbr.rel (0) target = $region21
    $region20: #{tpu_custom_call.1} parent=1 // pred_region
      %57 = dma.done [#allocation7], 512
    $region21: #{tpu_custom_call.1} parent=1 // pred_fallthru
      _
    // Predicated region
    $region22: #{tpu_custom_call.1} parent=1 // pred_check
      _
    $region23: #{tpu_custom_call.1} parent=1 // pred_check_branch
      %59 = sbr.rel (0) target = $region25
    $region24: #{tpu_custom_call.1} parent=1 // pred_region
      %61 = dma.done [#allocation7], 512
    $region25: #{tpu_custom_call.1} parent=1 // pred_fallthru
      _
    %p62 = scmp.eq.s32.totalorder 0, 0
    // Predicated region
    $region26: #{tpu_custom_call.1} parent=1 // pred_check
      %p63 = pneg %p62
    $region27: #{tpu_custom_call.1} parent=1 // pred_check_branch
      %65 = sbr.rel (%p63) target = $region29
    $region28: #{tpu_custom_call.1} parent=1 // pred_region
      %vm66 = vcmask 253952
      %67 = vst.msk [vmem:[#allocation2] sm:$0x1] %vm66, 0.0
    $region29: #{tpu_custom_call.1} parent=1 // pred_fallthru
      _
    %v68 = vld [vmem:[#allocation6] sm:$0xff]
    %v69 = vld [vmem:[#allocation6 + $0x8] sm:$0xff]
    %v70 = vld [vmem:[#allocation6 + $0x10] sm:$0xff]
    %v71 = vld [vmem:[#allocation6 + $0x18] sm:$0xff]
    %v72 = vld [vmem:[#allocation8] sm:$0xff]
    %v73 = vld [vmem:[#allocation8 + $0x8] sm:$0xff]
    %v74 = vld [vmem:[#allocation8 + $0x10] sm:$0xff]
    %v75 = vld [vmem:[#allocation8 + $0x18] sm:$0xff]
    %v76 = vsub.f32 %v68, %v72
    %v77 = vsub.f32 %v69, %v73
    %v78 = vsub.f32 %v70, %v74
    %v79 = vsub.f32 %v71, %v75
    %v80 = vand.u32 2147483647, %v76
    %v81 = vand.u32 2147483647, %v77
    %v82 = vand.u32 2147483647, %v78
    %v83 = vand.u32 2147483647, %v79
    %v84 = vld [vmem:[#allocation2] sm:$0x1]
    %vm85 = vcmask 261120
    %v86 = vsel %vm85, %v80, 0.0
    %v87 = vsel %vm85, %v81, 0.0
    %v88 = vadd.f32 %v86, %v87
    %v89 = vsel %vm85, %v82, 0.0
    %v90 = vadd.f32 %v88, %v89
    %v91 = vsel %vm85, %v83, 0.0
    %v92 = vadd.f32 %v90, %v91
    %v93 = vrot.slane %v92, 4
    %v94 = vadd.f32 %v92, %v93
    %v95 = vrot.slane %v94, 2
    %v96 = vadd.f32 %v94, %v95
    %v97 = vrot.slane %v96, 1
    %v98 = vadd.f32 %v96, %v97
    %v99 = vadd.f32 %v84, %v98
    %vm100 = vcmask 253952
    %101 = vst.msk [vmem:[#allocation2] sm:$0x1] %vm100, %v99
    // Predicated region
    $region30: #{tpu_custom_call.1} parent=1 // pred_check
      %p102 = pneg %p62
    $region31: #{tpu_custom_call.1} parent=1 // pred_check_branch
      %104 = sbr.rel (%p102) target = $region33
    $region32: #{tpu_custom_call.1} parent=1 // pred_region
      %v105 = vld [vmem:[#allocation2] sm:$0x1]
      %v106 = vsel %vm100, %v105, 0.0
      %107 = vadd.xlane.f32.xlu0 %v106
      %v108 = vpop.xlane.xlu0 %107
      %v109 = vrot.slane %v108, 4
      %v110 = vadd.f32 %v108, %v109
      %v111 = vrot.slane %v110, 2
      %v112 = vadd.f32 %v110, %v111
      %v113 = vrot.slane %v112, 1
      %v114 = vadd.f32 %v112, %v113
      %s115 = vtos %v114
      %s116 = smul.f32 %s115, 0.0009765625
      %v117 = vld [vmem:[#allocation3] sm:$0x3]
      %v118 = vld [vmem:[#allocation3 + $0x2] sm:$0x3]
      %v119 = vld [vmem:[#allocation3 + $0x4] sm:$0x3]
      %v120 = vld [vmem:[#allocation3 + $0x6] sm:$0x3]
      %v121 = vld [vmem:[#allocation3 + $0x8] sm:$0x3]
      %v122 = vld [vmem:[#allocation3 + $0xa] sm:$0x3]
      %v123 = vadd.f32 %v118, 1.0
      %v124 = vlog2.pop %v123
      %v125 = vmul.f32 %v124, 0.6931472
      %v126 = vsub.f32 %v117, %v125
      %v127 = vsub.f32 %v119, %v120
      %v128 = vsub.f32 %v121, %v122
      %v129 = vmul.f32 %v126, %v126
      %vm130 = vcmask 58368
      %v131 = vsel %vm130, %v129, 0.0
      %132 = vadd.xlane.f32.xlu0 %v131
      %v133 = vpop.xlane.xlu0 %132
      %v134 = vrot.slane %v133, 4
      %v135 = vadd.f32 %v133, %v134
      %v136 = vrot.slane %v135, 2
      %v137 = vadd.f32 %v135, %v136
      %v138 = vrot.slane %v137, 1
      %v139 = vadd.f32 %v137, %v138
      %s140 = vtos %v139
      %s141 = smul.f32 %s140, 0.0625
      %v142 = vmul.f32 %v127, %v127
      %v143 = vsel %vm130, %v142, 0.0
      %144 = vadd.xlane.f32.xlu0 %v143
      %v145 = vpop.xlane.xlu0 %144
      %v146 = vrot.slane %v145, 4
      %v147 = vadd.f32 %v145, %v146
      %v148 = vrot.slane %v147, 2
      %v149 = vadd.f32 %v147, %v148
      %v150 = vrot.slane %v149, 1
      %v151 = vadd.f32 %v149, %v150
      %s152 = vtos %v151
      %s153 = smul.f32 %s152, 0.0625
      %v154 = vmul.f32 %v128, %v128
      %v155 = vsel %vm130, %v154, 0.0
      %156 = vadd.xlane.f32.xlu0 %v155
      %v157 = vpop.xlane.xlu0 %156
      %v158 = vrot.slane %v157, 4
      %v159 = vadd.f32 %v157, %v158
      %v160 = vrot.slane %v159, 2
      %v161 = vadd.f32 %v159, %v160
      %v162 = vrot.slane %v161, 1
      %v163 = vadd.f32 %v161, %v162
      %s164 = vtos %v163
      %s165 = smul.f32 %s164, 0.0625
      %s166 = sadd.f32 %s116, %s141
      %s167 = sadd.f32 %s166, %s153
      %s168 = sadd.f32 %s167, %s165
      %v169 = vlaneseq
      %v170 = vand.u32 %v169, 127
      %vm171 = vcmp.eq.s32.totalorder %v170, 0
      %v172 = vstv %s168
      %v173 = vsel %vm171, %v172, 0.0
      %vm174 = vcmp.eq.s32.totalorder %v170, 1
      %v175 = vstv %s116
      %v176 = vsel %vm174, %v175, 0.0
      %v177 = vadd.f32 %v173, %v176
      %vm178 = vcmp.eq.s32.totalorder %v170, 2
      %v179 = vstv %s141
      %v180 = vsel %vm178, %v179, 0.0
      %v181 = vadd.f32 %v177, %v180
      %vm182 = vcmp.eq.s32.totalorder %v170, 3
      %v183 = vstv %s153
      %v184 = vsel %vm182, %v183, 0.0
      %v185 = vadd.f32 %v181, %v184
      %vm186 = vcmp.eq.s32.totalorder %v170, 4
      %v187 = vstv %s165
      %v188 = vsel %vm186, %v187, 0.0
      %v189 = vadd.f32 %v185, %v188
      %190 = vst [vmem:[#allocation9] sm:$0xff] %v189
    $region33: #{tpu_custom_call.1} parent=1 // pred_fallthru
      _
    // Predicated region
    $region34: #{tpu_custom_call.1} parent=1 // pred_check
      _
    $region35: #{tpu_custom_call.1} parent=1 // pred_check_branch
      %192 = sbr.rel (0) target = $region37
    $region36: #{tpu_custom_call.1} parent=1 // pred_region
      %194 = vsyncadd [#allocation5], 0
      %s196 = sshll.u32 [#allocation9], 4
      %s197 = int_to_ptr.vmem [resolvable:$true] %s196
      %s198 = sshll.u32 %s3, 4
      %s199 = int_to_ptr.hbm [resolvable:$true] %s198
      %201 = dma.vmem_to_hbm [thread:$0]  %s197, 128, %s199, [#allocation5]
    $region37: #{tpu_custom_call.1} parent=1 // pred_fallthru
      _
    // Predicated region
    $region38: #{tpu_custom_call.1} parent=1 // pred_check
      _
    $region39: #{tpu_custom_call.1} parent=1 // pred_check_branch
      %203 = sbr.rel (0) target = $region41
    $region40: #{tpu_custom_call.1} parent=1 // pred_region
      %205 = dma.done [#allocation5], 128
    $region41: #{tpu_custom_call.1} parent=1 // pred_fallthru
      _
    %206 = vsyncpa [#allocation4], 1
    %207 = vsyncpa [#allocation7], 1
    %208 = vsyncpa [#allocation5], 1

</llo_original>
